<compile_context>
chip_gen: v7x
topology: tpu7x:2x2x1
jax: 0.10.0
libtpu: 0.0.40
codegen_flags: <defaults>
</compile_context>

<pallas_src>
import math

import jax
import jax.numpy as jnp
from jax.experimental import pallas as pl
from jax.experimental.pallas import tpu as pltpu

_TARGET_BLOCK_BYTES = 4 * 1024 * 1024   # ~4 MiB block: 4x (dbl-buffered in+out) = 16 MiB VMEM
_VMEM_LIMIT_BYTES = 32 * 1024 * 1024    # explicit so v5e (16 MiB default) allows the blocks
_LANE_CANDIDATES = (8192, 4096, 2048, 1024, 512, 256, 128)


def _copy_kernel(x_ref, o_ref):
    # Straight element copy of the current (block_rows, lane) tile.
    o_ref[...] = x_ref[...]


def _resolve_shape(numel, shape):
    """Resolve a torch.view-style shape (may contain a single -1)."""
    shape = list(shape)
    if shape.count(-1) > 1:
        raise ValueError("only one dimension can be inferred")
    if -1 in shape:
        known = 1
        for s in shape:
            if s != -1:
                known *= s
        if known == 0 or numel % known != 0:
            raise ValueError(f"cannot view {numel} elements as {tuple(shape)}")
        shape[shape.index(-1)] = numel // known
    if math.prod(shape) != numel:
        raise ValueError(f"cannot view {numel} elements as {tuple(shape)}")
    return tuple(shape)


def _pick_lane_width(numel):
    """Widest lane dim (multiple of 128) that divides numel exactly."""
    for w in _LANE_CANDIDATES:
        if numel % w == 0:
            return w
    return None


def pallas_view(x, *shape, materialize=True):
    """Equivalent of torch `x.view(*shape)`.

    If `materialize=True`, the element stream is copied through a Pallas
    streaming kernel; otherwise (or when the Pallas layout constraints cannot
    be met without padding) a metadata-only jnp.reshape is used, which matches
    torch.view semantics exactly (a contiguous view is metadata-only).
    """
    numel = x.size
    out_shape = _resolve_shape(numel, shape)

    if not materialize or numel == 0:
        return jnp.reshape(x, out_shape)

    lane = _pick_lane_width(numel)
    if lane is None:
        # numel not a multiple of 128: a padded copy would add redundant HBM
        # traffic; torch.view is metadata-only anyway, so use plain reshape.
        return jnp.reshape(x, out_shape)

    itemsize = jnp.dtype(x.dtype).itemsize
    rows = numel // lane

    # dtype-aware sublane multiple: 8 (f32) / 16 (bf16) / 32 (int8, fp8).
    sublane = max(8, 32 // max(itemsize, 1))

    # Rows per block: aim for ~4 MiB, rounded down to a sublane multiple.
    target_rows = (_TARGET_BLOCK_BYTES // (lane * itemsize)) // sublane * sublane
    target_rows = max(sublane, target_rows)
    if target_rows >= rows:
        block_rows = rows            # whole-array block (always legal)
    else:
        block_rows = target_rows     # multiple of sublane; ragged last block is masked

    grid = (pl.cdiv(rows, block_rows),)

    # Row-major flatten into a lane-dense slab (metadata-only in XLA).
    slab = jnp.reshape(x, (rows, lane))

    copied = pl.pallas_call(
        _copy_kernel,
        out_shape=jax.ShapeDtypeStruct((rows, lane), x.dtype),
        grid_spec=pltpu.PrefetchScalarGridSpec(
            num_scalar_prefetch=0,
            grid=grid,
            in_specs=[pl.BlockSpec((block_rows, lane), lambda i: (i, 0))],
            out_specs=pl.BlockSpec((block_rows, lane), lambda i: (i, 0)),
        ),
        compiler_params=pltpu.CompilerParams(
            dimension_semantics=("parallel",),   # shards across v7x's 2 TCs
            vmem_limit_bytes=_VMEM_LIMIT_BYTES,
        ),
        cost_estimate=pl.CostEstimate(
            flops=0,
            transcendentals=0,
            bytes_accessed=2 * numel * itemsize,
        ),
    )(slab)

    # Metadata-only reshape to the requested view shape.
    return jnp.reshape(copied, out_shape)


class View:
    """JAX/Pallas port of the PyTorch View module."""

    def __init__(self, *shape):
        self.shape = shape

    def __call__(self, x):
        return pallas_view(x, *self.shape)


if __name__ == "__main__":
    key = jax.random.PRNGKey(0)
    # Small NCHW-ish input, consistent with typical UPSNet feature maps.
    x = jax.random.normal(key, (2, 4, 16, 16), dtype=jnp.float32)

    # View(2, -1): flatten everything but the batch dim (a common usage).
    out = jax.block_until_ready(View(2, -1)(x))
    ref = jnp.reshape(x, (2, -1))
    assert out.shape == (2, 4 * 16 * 16), out.shape
    assert out.dtype == x.dtype
    assert bool(jnp.all(out == ref))

    # Fully-specified target shape like View(2, 4, 256).
    out2 = jax.block_until_ready(View(2, 4, 256)(x))
    assert out2.shape == (2, 4, 256)
    assert bool(jnp.all(out2 == jnp.reshape(x, (2, 4, 256))))

    # bf16 path (exercises the dtype-aware sublane multiple).
    x_bf16 = x.astype(jnp.bfloat16)
    out3 = jax.block_until_ready(View(-1, 64)(x_bf16))
    assert out3.shape == (2 * 4 * 16 * 16 // 64, 64)
    assert out3.dtype == jnp.bfloat16
    assert bool(jnp.all(out3 == jnp.reshape(x_bf16, (-1, 64))))

    print("KERNEL_OK")
</pallas_src>

<mosaic_0001>
module attributes {stable_mosaic.version = 11 : i64} {
  func.func @_copy_kernel(%arg0: i32, %arg1: memref<1x2048xf32, #tpu.memory_space<vmem>>, %arg2: memref<1x2048xf32, #tpu.memory_space<vmem>>) attributes {dimension_semantics = [#tpu.dimension_semantics<parallel>], iteration_bounds = array<i64: 1>, scalar_prefetch = 0 : i64, scratch_operands = 0 : i64, tpu.core_type = #tpu.core_type<tc>, window_params = [{transform_indices = @transform_0, window_bounds = array<i64: 1, 2048>}, {transform_indices = @transform_1, window_bounds = array<i64: 1, 2048>}]} {
    %c0 = arith.constant 0 : index
    %c0_0 = arith.constant 0 : index
    %0 = vector.load %arg1[%c0, %c0_0] : memref<1x2048xf32, #tpu.memory_space<vmem>>, vector<1x2048xf32>
    %c0_1 = arith.constant 0 : index
    %c0_2 = arith.constant 0 : index
    %1 = vector.load %arg2[%c0_1, %c0_2] : memref<1x2048xf32, #tpu.memory_space<vmem>>, vector<1x2048xf32>
    tpu.vector_store %arg2[%c0_1, %c0_2], %0 {strides = array<i32>} : memref<1x2048xf32, #tpu.memory_space<vmem>>, vector<1x2048xf32>,
    return
  }
  func.func @transform_0(%arg0: i32) -> (i32, i32) {
    %c0_i32 = arith.constant 0 : i32
    %c0_i32_0 = arith.constant 0 : i32
    return %arg0, %c0_i32 : i32, i32
  }
  func.func @transform_1(%arg0: i32) -> (i32, i32) {
    %c0_i32 = arith.constant 0 : i32
    %c0_i32_0 = arith.constant 0 : i32
    return %arg0, %c0_i32 : i32, i32
  }
}

</mosaic_0001>

<llo_original>
// kernel: tpu_custom_call.1
$region0: #{tpu_custom_call.1}
  #allocation0 [shape = 'u32[]', space=smem, size = 0x4, offset = 0x4, fixed_abs, tag = 'smem constant byte address 0x4 - core index']
  #allocation1 [shape = 'u32[144,128]{1,0:T(1,128)}', space=vmem, size = 0x12000, scoped, tag = 'internal scratch']
  %s0 = inlined_call_operand.hbm [shape: f32[1,2048], index: 0, kind: input, shape index: {}]
  %s1 = inlined_call_operand.hbm [shape: f32[1,2048], index: 1, kind: output, shape index: {}]
  %s2 = sld [smem:[#allocation0]]
  $region18: #{tpu_custom_call.1} parent=0
    _
  %s4 = ssub.s32 1, %s2
  %s5 = scalar_select 0, %s4, %s2
  $region1: #{tpu_custom_call.1} parent=0
    #allocation2 [shape = 'u8[8192]{0}', space=vmem, size = 0x2000, scoped, tag = 'input window, operand 0, single buffered']
    #allocation3 [shape = 's32[1]{0}', space=sflag, size = 0x4, scoped, tag = 'scoped memory for tpu_custom_call.1']
    #allocation4 [shape = 's32[1]{0}', space=sflag, size = 0x4, scoped, tag = 'scoped memory for tpu_custom_call.1']
    #allocation5 [shape = 'u8[8192]{0}', space=vmem, size = 0x2000, scoped, tag = 'output window, operand 0, single buffered']
    %6 = vsyncpa [#allocation3], 0
    %7 = vsyncpa [#allocation4], 0
    // Predicated region
    $region2: #{tpu_custom_call.1} parent=1 // pred_check
      _
    $region3: #{tpu_custom_call.1} parent=1 // pred_check_branch
      %9 = sbr.rel (0) target = $region5
    $region4: #{tpu_custom_call.1} parent=1 // pred_region
      %s11 = ssub.s32 256, 256
      %12 = vsyncadd [#allocation3], %s11
      %s14 = sshll.u32 [#allocation2], 4
      %s15 = int_to_ptr.vmem [resolvable:$true] %s14
      %17 = dma.hbm_to_vmem [thread:$0]  %s0, 256, %s15, [#allocation3]
    $region5: #{tpu_custom_call.1} parent=1 // pred_fallthru
      _
    // Predicated region
    $region6: #{tpu_custom_call.1} parent=1 // pred_check
      _
    $region7: #{tpu_custom_call.1} parent=1 // pred_check_branch
      %19 = sbr.rel (0) target = $region9
    $region8: #{tpu_custom_call.1} parent=1 // pred_region
      %20 = dma.done [#allocation3], 256
    $region9: #{tpu_custom_call.1} parent=1 // pred_fallthru
      _
    %v21 = vld [vmem:[#allocation2] sm:$0xff]
    %v22 = vld [vmem:[#allocation2 + $0x8] sm:$0xff]
    %23 = vst [vmem:[#allocation5] sm:$0xff] %v21
    %24 = vst [vmem:[#allocation5 + $0x8] sm:$0xff] %v22
    // Predicated region
    $region10: #{tpu_custom_call.1} parent=1 // pred_check
      _
    $region11: #{tpu_custom_call.1} parent=1 // pred_check_branch
      %26 = sbr.rel (0) target = $region13
    $region12: #{tpu_custom_call.1} parent=1 // pred_region
      %s28 = ssub.s32 256, 256
      %29 = vsyncadd [#allocation4], %s28
      %s31 = sshll.u32 [#allocation5], 4
      %s32 = int_to_ptr.vmem [resolvable:$true] %s31
      %34 = dma.vmem_to_hbm [thread:$0]  %s32, 256, %s1, [#allocation4]
    $region13: #{tpu_custom_call.1} parent=1 // pred_fallthru
      _
    // Predicated region
    $region14: #{tpu_custom_call.1} parent=1 // pred_check
      _
    $region15: #{tpu_custom_call.1} parent=1 // pred_check_branch
      %36 = sbr.rel (0) target = $region17
    $region16: #{tpu_custom_call.1} parent=1 // pred_region
      %37 = dma.done [#allocation4], 256
    $region17: #{tpu_custom_call.1} parent=1 // pred_fallthru
      _
    %38 = vsyncpa [#allocation3], 1
    %39 = vsyncpa [#allocation4], 1

</llo_original>
